<compile_context>
chip_gen: v5e
topology: v5e:2x2
jax: 0.10.0
libtpu: 0.0.40
codegen_flags: <defaults>
</compile_context>

<pallas_src>
import jax
import jax.numpy as jnp
from jax.experimental import pallas as pl
from jax.experimental.pallas import tpu as pltpu

LANE = 128


def _round_up(n, m):
    return ((n + m - 1) // m) * m


def _basic_net_kernel(x_ref, w1_ref, b1_ref, w2_ref, b2_ref, w3_ref, b3_ref,
                      o_ref):
    """Fused forward for one batch tile:
    (x@W1+b1)->relu->(@W2+b2)->relu->(@W3+b3)->softmax(dim=1)."""
    # Cast the f32 activation tile to bf16 only at the MXU input.
    x = x_ref[...].astype(w1_ref.dtype)                          # (TB, F) bf16

    # Layer 1 + ReLU (accumulate in f32, element-wise work in f32)
    h = jnp.dot(x, w1_ref[...], preferred_element_type=jnp.float32) + b1_ref[...]
    h = jnp.maximum(h, 0.0)

    # Layer 2 + ReLU
    h = jnp.dot(h.astype(w2_ref.dtype), w2_ref[...],
                preferred_element_type=jnp.float32) + b2_ref[...]
    h = jnp.maximum(h, 0.0)

    # Layer 3 (true C output columns, no class padding)
    logits = jnp.dot(h.astype(w3_ref.dtype), w3_ref[...],
                     preferred_element_type=jnp.float32) + b3_ref[...]

    # Softmax over the class axis (dim=1). Exact divide: the epilogue is far
    # off the critical path (HBM-bound), and exactness keeps row sums == 1.
    m = jnp.max(logits, axis=1, keepdims=True)
    e = jnp.exp(logits - m)
    denom = jnp.sum(e, axis=1, keepdims=True)
    o_ref[...] = (e / denom).astype(o_ref.dtype)


def prepare_params(w1, b1, w2, b2, w3, b3):
    """One-time (model-init) padding + bf16 cast of the weights.

    Hidden feature dims are zero-padded to 128 lanes so the two hidden matmuls
    and their ReLU epilogues are lane-dense; the class dim C stays at its true
    size so the output store is only C lanes wide. Zero-padded W columns plus
    zero-padded biases produce exactly-zero (then ReLU'd) padded activations,
    and zero-padded W3 rows ignore them, so semantics are exact.
    """
    F, H1 = w1.shape
    H2, C = w2.shape[1], w3.shape[1]
    H1p, H2p = _round_up(H1, LANE), _round_up(H2, LANE)

    w1p = jnp.zeros((F, H1p), jnp.bfloat16).at[:, :H1].set(w1.astype(jnp.bfloat16))
    b1p = jnp.zeros((1, H1p), jnp.float32).at[:, :H1].set(b1)
    w2p = jnp.zeros((H1p, H2p), jnp.bfloat16).at[:H1, :H2].set(w2.astype(jnp.bfloat16))
    b2p = jnp.zeros((1, H2p), jnp.float32).at[:, :H2].set(b2)
    w3p = jnp.zeros((H2p, C), jnp.bfloat16).at[:H2, :].set(w3.astype(jnp.bfloat16))
    b3p = b3.astype(jnp.float32).reshape(1, C)
    return w1p, b1p, w2p, b2p, w3p, b3p


@jax.jit
def basic_net_forward(x, w1p, b1p, w2p, b2p, w3p, b3p):
    B, F = x.shape
    C = w3p.shape[1]

    # Batch tile: >= 2 grid steps when B >= 16 (megacore split on v7x),
    # capped at 1024 rows (large tiles amortize step overhead on v5e/v6e).
    TB = max(8, min(1024, _round_up(-(-B // 2), 8)))
    Bp = _round_up(B, TB)
    if Bp != B:
        x = jnp.zeros((Bp, F), x.dtype).at[:B].set(x)

    grid = (Bp // TB,)
    resident = lambda a: pl.BlockSpec(a.shape, lambda i: (0, 0))  # stays in VMEM

    out = pl.pallas_call(
        _basic_net_kernel,
        out_shape=jax.ShapeDtypeStruct((Bp, C), jnp.float32),
        grid=grid,
        in_specs=[
            pl.BlockSpec((TB, F), lambda i: (i, 0)),   # x: streamed per batch tile
            resident(w1p), resident(b1p),
            resident(w2p), resident(b2p),
            resident(w3p), resident(b3p),
        ],
        out_specs=pl.BlockSpec((TB, C), lambda i: (i, 0)),
        compiler_params=pltpu.CompilerParams(
            dimension_semantics=("parallel",),          # megacore sharding on v7x
        ),
    )(x, w1p, b1p, w2p, b2p, w3p, b3p)

    return out if Bp == B else out[:B]


def _reference(x, w1, b1, w2, b2, w3, b3):
    h = jnp.maximum(x @ w1 + b1, 0.0)
    h = jnp.maximum(h @ w2 + b2, 0.0)
    return jax.nn.softmax(h @ w3 + b3, axis=1)


def _init_linear(key, fan_in, fan_out):
    """Deterministic init mimicking PyTorch nn.Linear (uniform +/- 1/sqrt(fan_in))."""
    kw, kb = jax.random.split(key)
    bound = 1.0 / jnp.sqrt(jnp.float32(fan_in))
    w = jax.random.uniform(kw, (fan_in, fan_out), jnp.float32, -bound, bound)
    b = jax.random.uniform(kb, (1, fan_out), jnp.float32, -bound, bound)
    return w, b


if __name__ == "__main__":
    # model_config equivalent:
    #   n_features = 32, hidden_sizes = [64, 64, 16], activation = 'relu',
    #   dropout = None (so the dropout branches are skipped, matching forward()).
    batch = 8
    n_features = 32
    hidden_sizes = (64, 64, 16)

    key = jax.random.PRNGKey(0)
    kx, k1, k2, k3 = jax.random.split(key, 4)

    x = jax.random.normal(kx, (batch, n_features), jnp.float32)
    w1, b1 = _init_linear(k1, n_features, hidden_sizes[0])
    w2, b2 = _init_linear(k2, hidden_sizes[0], hidden_sizes[1])
    w3, b3 = _init_linear(k3, hidden_sizes[1], hidden_sizes[2])

    # One-time padding/cast of the parameters (outside the per-call jitted path).
    params = prepare_params(w1, b1, w2, b2, w3, b3)

    out = basic_net_forward(x, *params)
    out = jax.block_until_ready(out)

    # sanity: shape, rows sum to 1 (exact divide -> tight tolerance), and
    # agreement with a pure-JAX f32 reference (bf16 MXU -> loose tolerance).
    assert out.shape == (batch, hidden_sizes[2])
    assert bool(jnp.allclose(jnp.sum(out, axis=1), 1.0, atol=1e-4))
    ref = _reference(x, w1, b1, w2, b2, w3, b3)
    assert bool(jnp.allclose(out, ref, atol=2e-2))

    print("KERNEL_OK")
</pallas_src>

<mosaic_0001>
module attributes {stable_mosaic.version = 11 : i64} {
  func.func @_basic_net_kernel(%arg0: i32, %arg1: memref<8x32xf32, #tpu.memory_space<vmem>>, %arg2: memref<32x128xbf16, #tpu.memory_space<vmem>>, %arg3: memref<1x128xf32, #tpu.memory_space<vmem>>, %arg4: memref<128x128xbf16, #tpu.memory_space<vmem>>, %arg5: memref<1x128xf32, #tpu.memory_space<vmem>>, %arg6: memref<128x16xbf16, #tpu.memory_space<vmem>>, %arg7: memref<1x16xf32, #tpu.memory_space<vmem>>, %arg8: memref<8x16xf32, #tpu.memory_space<vmem>>) attributes {dimension_semantics = [#tpu.dimension_semantics<parallel>], iteration_bounds = array<i64: 1>, scalar_prefetch = 0 : i64, scratch_operands = 0 : i64, tpu.core_type = #tpu.core_type<tc>, window_params = [{transform_indices = @transform_0, window_bounds = array<i64: 8, 32>}, {pipeline_mode = #tpu.pipeline_mode<synchronous>, transform_indices = @transform_1, window_bounds = array<i64: 32, 128>}, {pipeline_mode = #tpu.pipeline_mode<synchronous>, transform_indices = @transform_2, window_bounds = array<i64: 1, 128>}, {pipeline_mode = #tpu.pipeline_mode<synchronous>, transform_indices = @transform_3, window_bounds = array<i64: 128, 128>}, {pipeline_mode = #tpu.pipeline_mode<synchronous>, transform_indices = @transform_4, window_bounds = array<i64: 1, 128>}, {pipeline_mode = #tpu.pipeline_mode<synchronous>, transform_indices = @transform_5, window_bounds = array<i64: 128, 16>}, {pipeline_mode = #tpu.pipeline_mode<synchronous>, transform_indices = @transform_6, window_bounds = array<i64: 1, 16>}, {transform_indices = @transform_7, window_bounds = array<i64: 8, 16>}]} {
    %c0 = arith.constant 0 : index
    %c0_0 = arith.constant 0 : index
    %0 = vector.load %arg1[%c0, %c0_0] : memref<8x32xf32, #tpu.memory_space<vmem>>, vector<8x32xf32>
    %1 = arith.truncf %0 : vector<8x32xf32> to vector<8x32xbf16>
    %c0_1 = arith.constant 0 : index
    %c0_2 = arith.constant 0 : index
    %2 = vector.load %arg2[%c0_1, %c0_2] : memref<32x128xbf16, #tpu.memory_space<vmem>>, vector<32x128xbf16>
    %cst = arith.constant dense<0.000000e+00> : vector<8x128xf32>
    %3 = tpu.matmul %1, %2, %cst {dimension_numbers = #tpu.dot_dimension_numbers<[1], [0], [0], [1], [0, 0, 1, 1], [], []>} : vector<8x32xbf16>, vector<32x128xbf16>, vector<8x128xf32> -> vector<8x128xf32>
    %c0_3 = arith.constant 0 : index
    %c0_4 = arith.constant 0 : index
    %4 = vector.load %arg3[%c0_3, %c0_4] : memref<1x128xf32, #tpu.memory_space<vmem>>, vector<1x128xf32>
    %5 = vector.broadcast %4 : vector<1x128xf32> to vector<8x128xf32>
    %6 = arith.addf %3, %5 : vector<8x128xf32>
    %cst_5 = arith.constant 0.000000e+00 : f32
    %7 = vector.broadcast %cst_5 : f32 to vector<8x128xf32>
    %8 = arith.maximumf %6, %7 : vector<8x128xf32>
    %9 = arith.truncf %8 : vector<8x128xf32> to vector<8x128xbf16>
    %c0_6 = arith.constant 0 : index
    %c0_7 = arith.constant 0 : index
    %10 = vector.load %arg4[%c0_6, %c0_7] : memref<128x128xbf16, #tpu.memory_space<vmem>>, vector<128x128xbf16>
    %cst_8 = arith.constant dense<0.000000e+00> : vector<8x128xf32>
    %11 = tpu.matmul %9, %10, %cst_8 {dimension_numbers = #tpu.dot_dimension_numbers<[1], [0], [0], [1], [0, 0, 1, 1], [], []>} : vector<8x128xbf16>, vector<128x128xbf16>, vector<8x128xf32> -> vector<8x128xf32>
    %c0_9 = arith.constant 0 : index
    %c0_10 = arith.constant 0 : index
    %12 = vector.load %arg5[%c0_9, %c0_10] : memref<1x128xf32, #tpu.memory_space<vmem>>, vector<1x128xf32>
    %13 = vector.broadcast %12 : vector<1x128xf32> to vector<8x128xf32>
    %14 = arith.addf %11, %13 : vector<8x128xf32>
    %cst_11 = arith.constant 0.000000e+00 : f32
    %15 = vector.broadcast %cst_11 : f32 to vector<8x128xf32>
    %16 = arith.maximumf %14, %15 : vector<8x128xf32>
    %17 = arith.truncf %16 : vector<8x128xf32> to vector<8x128xbf16>
    %c0_12 = arith.constant 0 : index
    %c0_13 = arith.constant 0 : index
    %18 = vector.load %arg6[%c0_12, %c0_13] : memref<128x16xbf16, #tpu.memory_space<vmem>>, vector<128x16xbf16>
    %cst_14 = arith.constant dense<0.000000e+00> : vector<8x16xf32>
    %19 = tpu.matmul %17, %18, %cst_14 {dimension_numbers = #tpu.dot_dimension_numbers<[1], [0], [0], [1], [0, 0, 1, 1], [], []>} : vector<8x128xbf16>, vector<128x16xbf16>, vector<8x16xf32> -> vector<8x16xf32>
    %c0_15 = arith.constant 0 : index
    %c0_16 = arith.constant 0 : index
    %20 = vector.load %arg7[%c0_15, %c0_16] : memref<1x16xf32, #tpu.memory_space<vmem>>, vector<1x16xf32>
    %21 = vector.broadcast %20 : vector<1x16xf32> to vector<8x16xf32>
    %22 = arith.addf %19, %21 : vector<8x16xf32>
    %cst_17 = arith.constant dense<0xFF800000> : vector<8xf32>
    %23 = vector.multi_reduction <maximumf>, %22, %cst_17 [1] : vector<8x16xf32> to vector<8xf32>
    %24 = vector.shape_cast %23 : vector<8xf32> to vector<8x1xf32>
    %25 = vector.broadcast %24 : vector<8x1xf32> to vector<8x16xf32>
    %26 = arith.subf %22, %25 : vector<8x16xf32>
    %27 = math.exp %26 : vector<8x16xf32>
    %cst_18 = arith.constant dense<0.000000e+00> : vector<8xf32>
    %28 = vector.multi_reduction <add>, %27, %cst_18 [1] : vector<8x16xf32> to vector<8xf32>
    %29 = vector.shape_cast %28 : vector<8xf32> to vector<8x1xf32>
    %30 = vector.broadcast %29 : vector<8x1xf32> to vector<8x16xf32>
    %31 = arith.divf %27, %30 : vector<8x16xf32>
    %c0_19 = arith.constant 0 : index
    %c0_20 = arith.constant 0 : index
    %32 = vector.load %arg8[%c0_19, %c0_20] : memref<8x16xf32, #tpu.memory_space<vmem>>, vector<8x16xf32>
    tpu.vector_store %arg8[%c0_19, %c0_20], %31 {strides = array<i32>} : memref<8x16xf32, #tpu.memory_space<vmem>>, vector<8x16xf32>,
    return
  }
  func.func @transform_0(%arg0: i32) -> (i32, i32) {
    %c0_i32 = arith.constant 0 : i32
    %c0_i32_0 = arith.constant 0 : i32
    return %arg0, %c0_i32 : i32, i32
  }
  func.func @transform_1(%arg0: i32) -> (i32, i32) {
    %c0_i32 = arith.constant 0 : i32
    %c0_i32_0 = arith.constant 0 : i32
    %c0_i32_1 = arith.constant 0 : i32
    return %c0_i32, %c0_i32_0 : i32, i32
  }
  func.func @transform_2(%arg0: i32) -> (i32, i32) {
    %c0_i32 = arith.constant 0 : i32
    %c0_i32_0 = arith.constant 0 : i32
    %c0_i32_1 = arith.constant 0 : i32
    return %c0_i32, %c0_i32_0 : i32, i32
  }
  func.func @transform_3(%arg0: i32) -> (i32, i32) {
    %c0_i32 = arith.constant 0 : i32
    %c0_i32_0 = arith.constant 0 : i32
    %c0_i32_1 = arith.constant 0 : i32
    return %c0_i32, %c0_i32_0 : i32, i32
  }
  func.func @transform_4(%arg0: i32) -> (i32, i32) {
    %c0_i32 = arith.constant 0 : i32
    %c0_i32_0 = arith.constant 0 : i32
    %c0_i32_1 = arith.constant 0 : i32
    return %c0_i32, %c0_i32_0 : i32, i32
  }
  func.func @transform_5(%arg0: i32) -> (i32, i32) {
    %c0_i32 = arith.constant 0 : i32
    %c0_i32_0 = arith.constant 0 : i32
    %c0_i32_1 = arith.constant 0 : i32
    return %c0_i32, %c0_i32_0 : i32, i32
  }
  func.func @transform_6(%arg0: i32) -> (i32, i32) {
    %c0_i32 = arith.constant 0 : i32
    %c0_i32_0 = arith.constant 0 : i32
    %c0_i32_1 = arith.constant 0 : i32
    return %c0_i32, %c0_i32_0 : i32, i32
  }
  func.func @transform_7(%arg0: i32) -> (i32, i32) {
    %c0_i32 = arith.constant 0 : i32
    %c0_i32_0 = arith.constant 0 : i32
    return %arg0, %c0_i32 : i32, i32
  }
}

</mosaic_0001>

<llo_original>
// kernel: basic_net_forward.1
$region0: #{basic_net_forward.1}
  #allocation0 [shape = 'u32[]', space=smem, size = 0x4, offset = 0x4, fixed_abs, tag = 'smem constant byte address 0x4 - core index']
  #allocation1 [shape = 'u32[72,128]{1,0:T(1,128)}', space=vmem, size = 0x9000, scoped, tag = 'internal scratch']
  %s0 = inlined_call_operand.vmem [shape: f32[8,32], index: 0, kind: input, shape index: {}]
  %s1 = inlined_call_operand.hbm [shape: bf16[32,128], index: 1, kind: input, shape index: {}]
  %s2 = inlined_call_operand.vmem [shape: f32[1,128], index: 2, kind: input, shape index: {}]
  %s3 = inlined_call_operand.vmem [shape: bf16[128,128], index: 3, kind: input, shape index: {}]
  %s4 = inlined_call_operand.vmem [shape: f32[1,128], index: 4, kind: input, shape index: {}]
  %s5 = inlined_call_operand.vmem [shape: bf16[128,16], index: 5, kind: input, shape index: {}]
  %s6 = inlined_call_operand.vmem [shape: f32[1,16], index: 6, kind: input, shape index: {}]
  %s7 = inlined_call_operand.hbm [shape: f32[8,16], index: 7, kind: output, shape index: {}]
  %s8 = sld [smem:[#allocation0]]
  $region42: #{basic_net_forward.1} parent=0
    _
  %s10 = ssub.s32 1, %s8
  %s11 = scalar_select 0, %s10, %s8
  $region1: #{basic_net_forward.1} parent=0
    #allocation2 [shape = 'u8[8192]{0}', space=vmem, size = 0x2000, scoped, tag = 'input window, operand 1, single buffered']
    #allocation3 [shape = 's32[1]{0}', space=sflag, size = 0x4, scoped, tag = 'scoped memory for basic_net_forward.1']
    #allocation4 [shape = 's32[1]{0}', space=sflag, size = 0x4, scoped, tag = 'scoped memory for basic_net_forward.1']
    #allocation5 [shape = 'u8[4096]{0}', space=vmem, size = 0x1000, scoped, tag = 'output window, operand 0, single buffered']
    %12 = vsyncpa [#allocation3], 0
    %13 = vsyncpa [#allocation4], 0
    // Predicated region
    $region2: #{basic_net_forward.1} parent=1 // pred_check
      _
    $region3: #{basic_net_forward.1} parent=1 // pred_check_branch
      %15 = sbr.rel (0) target = $region5
    $region4: #{basic_net_forward.1} parent=1 // pred_region
      _
    $region5: #{basic_net_forward.1} parent=1 // pred_fallthru
      _
    // Predicated region
    $region6: #{basic_net_forward.1} parent=1 // pred_check
      _
    $region7: #{basic_net_forward.1} parent=1 // pred_check_branch
      %17 = sbr.rel (0) target = $region9
    $region8: #{basic_net_forward.1} parent=1 // pred_region
      %19 = vsyncadd [#allocation3], 0
      %s20 = sshll.u32 %s1, 4
      %s21 = int_to_ptr.hbm [resolvable:$true] %s20
      %s22 = sshll.u32 [#allocation2], 4
      %s23 = int_to_ptr.vmem [resolvable:$true] %s22
      %28 = dma.hbm_to_vmem [thread:$0]  %s21, 256, %s23, [#allocation3], 64, 64, 4
    $region9: #{basic_net_forward.1} parent=1 // pred_fallthru
      _
    // Predicated region
    $region10: #{basic_net_forward.1} parent=1 // pred_check
      _
    $region11: #{basic_net_forward.1} parent=1 // pred_check_branch
      %30 = sbr.rel (0) target = $region13
    $region12: #{basic_net_forward.1} parent=1 // pred_region
      _
    $region13: #{basic_net_forward.1} parent=1 // pred_fallthru
      _
    // Predicated region
    $region14: #{basic_net_forward.1} parent=1 // pred_check
      _
    $region15: #{basic_net_forward.1} parent=1 // pred_check_branch
      %32 = sbr.rel (0) target = $region17
    $region16: #{basic_net_forward.1} parent=1 // pred_region
      _
    $region17: #{basic_net_forward.1} parent=1 // pred_fallthru
      _
    // Predicated region
    $region18: #{basic_net_forward.1} parent=1 // pred_check
      _
    $region19: #{basic_net_forward.1} parent=1 // pred_check_branch
      %34 = sbr.rel (0) target = $region21
    $region20: #{basic_net_forward.1} parent=1 // pred_region
      _
    $region21: #{basic_net_forward.1} parent=1 // pred_fallthru
      _
    // Predicated region
    $region22: #{basic_net_forward.1} parent=1 // pred_check
      _
    $region23: #{basic_net_forward.1} parent=1 // pred_check_branch
      %36 = sbr.rel (0) target = $region25
    $region24: #{basic_net_forward.1} parent=1 // pred_region
      _
    $region25: #{basic_net_forward.1} parent=1 // pred_fallthru
      _
    // Predicated region
    $region26: #{basic_net_forward.1} parent=1 // pred_check
      _
    $region27: #{basic_net_forward.1} parent=1 // pred_check_branch
      %38 = sbr.rel (0) target = $region29
    $region28: #{basic_net_forward.1} parent=1 // pred_region
      _
    $region29: #{basic_net_forward.1} parent=1 // pred_fallthru
      _
    // Predicated region
    $region30: #{basic_net_forward.1} parent=1 // pred_check
      _
    $region31: #{basic_net_forward.1} parent=1 // pred_check_branch
      %40 = sbr.rel (0) target = $region33
    $region32: #{basic_net_forward.1} parent=1 // pred_region
      %42 = dma.done [#allocation3], 256
    $region33: #{basic_net_forward.1} parent=1 // pred_fallthru
      _
    %v44 = vld [vmem:[%s0] sm:$0xff]
    %v45 = vpack.c.bf16 %v44, %v44
    %v46 = vld [vmem:[#allocation2] sm:$0xf]
    %v47 = vld [vmem:[#allocation2 + $0x4] sm:$0xf]
    %v48 = vld [vmem:[#allocation2 + $0x8] sm:$0xf]
    %v49 = vld [vmem:[#allocation2 + $0xc] sm:$0xf]
    %v50 = vld [vmem:[%s2] sm:$0x1]
    %v52 = vperm.slane %v50, 0
    %v58 = vunpack.c.l.b16 %v46
    %v59 = vunpack.c.l.b16 %v47
    %v60 = vunpack.c.l.b16 %v48
    %v61 = vunpack.c.l.b16 %v49
    %v62 = vpack.c.b16 %v59, %v58
    %v63 = vpack.c.b16 %v61, %v60
    %vm66 = vcmask 261120
    %v68 = vsel %vm66, %v45, 0
    %70 = vmatpush.bf16.msra.mxu0 0
    %71 = vmatpush.bf16.msra.mxu0 0
    %72 = vmatpush.bf16.msra.mxu0 0
    %73 = vmatpush.bf16.msra.mxu0 0
    %74 = vmatpush.bf16.msra.mxu0 0
    %75 = vmatpush.bf16.msra.mxu0 0
    %76 = vmatpush.bf16.msra.mxu0 %v63
    %77 = vmatpush.bf16.msra.mxu0 %v62
    %78 = vmatmul.bf16.gmra.mxu0 %v68
    %v79 = vpop.f32.mrf.mxu0
    %v80 = vadd.f32 %v52, %v79
    %v81 = vpop.f32.mrf.mxu0
    %82 = vdwg.mxu0
    %v83 = vmax.f32 %v80, 0.0
    %v84 = vpack.c.bf16 %v83, %v83
    %v85 = vld [vmem:[%s3] sm:$0xf]
    %v86 = vld [vmem:[%s3 + $0x4] sm:$0xf]
    %v87 = vld [vmem:[%s3 + $0x8] sm:$0xf]
    %v88 = vld [vmem:[%s3 + $0xc] sm:$0xf]
    %v89 = vld [vmem:[%s3 + $0x10] sm:$0xf]
    %v90 = vld [vmem:[%s3 + $0x14] sm:$0xf]
    %v91 = vld [vmem:[%s3 + $0x18] sm:$0xf]
    %v92 = vld [vmem:[%s3 + $0x1c] sm:$0xf]
    %v93 = vld [vmem:[%s3 + $0x20] sm:$0xf]
    %v94 = vld [vmem:[%s3 + $0x24] sm:$0xf]
    %v95 = vld [vmem:[%s3 + $0x28] sm:$0xf]
    %v96 = vld [vmem:[%s3 + $0x2c] sm:$0xf]
    %v97 = vld [vmem:[%s3 + $0x30] sm:$0xf]
    %v98 = vld [vmem:[%s3 + $0x34] sm:$0xf]
    %v99 = vld [vmem:[%s3 + $0x38] sm:$0xf]
    %v100 = vld [vmem:[%s3 + $0x3c] sm:$0xf]
    %v101 = vld [vmem:[%s4] sm:$0x1]
    %v103 = vperm.slane %v101, 0
    %v121 = vunpack.c.l.b16 %v85
    %v122 = vunpack.c.l.b16 %v86
    %v123 = vunpack.c.l.b16 %v87
    %v124 = vunpack.c.l.b16 %v88
    %v125 = vunpack.c.l.b16 %v89
    %v126 = vunpack.c.l.b16 %v90
    %v127 = vunpack.c.l.b16 %v91
    %v128 = vunpack.c.l.b16 %v92
    %v129 = vunpack.c.l.b16 %v93
    %v130 = vunpack.c.l.b16 %v94
    %v131 = vunpack.c.l.b16 %v95
    %v132 = vunpack.c.l.b16 %v96
    %v133 = vunpack.c.l.b16 %v97
    %v134 = vunpack.c.l.b16 %v98
    %v135 = vunpack.c.l.b16 %v99
    %v136 = vunpack.c.l.b16 %v100
    %v137 = vpack.c.b16 %v122, %v121
    %v138 = vpack.c.b16 %v124, %v123
    %v139 = vpack.c.b16 %v126, %v125
    %v140 = vpack.c.b16 %v128, %v127
    %v141 = vpack.c.b16 %v130, %v129
    %v142 = vpack.c.b16 %v132, %v131
    %v143 = vpack.c.b16 %v134, %v133
    %v144 = vpack.c.b16 %v136, %v135
    %153 = vmatpush.bf16.msra.mxu0 %v144
    %154 = vmatpush.bf16.msra.mxu0 %v143
    %155 = vmatpush.bf16.msra.mxu0 %v142
    %156 = vmatpush.bf16.msra.mxu0 %v141
    %157 = vmatpush.bf16.msra.mxu0 %v140
    %158 = vmatpush.bf16.msra.mxu0 %v139
    %159 = vmatpush.bf16.msra.mxu0 %v138
    %160 = vmatpush.bf16.msra.mxu0 %v137
    %161 = vmatmul.bf16.gmra.mxu0 %v84
    %v162 = vpop.f32.mrf.mxu0
    %v163 = vadd.f32 %v103, %v162
    %v164 = vpop.f32.mrf.mxu0
    %165 = vdwg.mxu0
    %v166 = vmax.f32 %v163, 0.0
    %v167 = vpack.c.bf16 %v166, %v166
    %v168 = vld [vmem:[%s5] sm:$0xf]
    %v169 = vld [vmem:[%s5 + $0x4] sm:$0xf]
    %v170 = vld [vmem:[%s5 + $0x8] sm:$0xf]
    %v171 = vld [vmem:[%s5 + $0xc] sm:$0xf]
    %v172 = vld [vmem:[%s5 + $0x10] sm:$0xf]
    %v173 = vld [vmem:[%s5 + $0x14] sm:$0xf]
    %v174 = vld [vmem:[%s5 + $0x18] sm:$0xf]
    %v175 = vld [vmem:[%s5 + $0x1c] sm:$0xf]
    %v176 = vld [vmem:[%s5 + $0x20] sm:$0xf]
    %v177 = vld [vmem:[%s5 + $0x24] sm:$0xf]
    %v178 = vld [vmem:[%s5 + $0x28] sm:$0xf]
    %v179 = vld [vmem:[%s5 + $0x2c] sm:$0xf]
    %v180 = vld [vmem:[%s5 + $0x30] sm:$0xf]
    %v181 = vld [vmem:[%s5 + $0x34] sm:$0xf]
    %v182 = vld [vmem:[%s5 + $0x38] sm:$0xf]
    %v183 = vld [vmem:[%s5 + $0x3c] sm:$0xf]
    %v184 = vld [vmem:[%s6] sm:$0x1]
    %v186 = vperm.slane %v184, 0
    %v204 = vunpack.c.l.b16 %v168
    %v205 = vunpack.c.l.b16 %v169
    %v206 = vunpack.c.l.b16 %v170
    %v207 = vunpack.c.l.b16 %v171
    %v208 = vunpack.c.l.b16 %v172
    %v209 = vunpack.c.l.b16 %v173
    %v210 = vunpack.c.l.b16 %v174
    %v211 = vunpack.c.l.b16 %v175
    %v212 = vunpack.c.l.b16 %v176
    %v213 = vunpack.c.l.b16 %v177
    %v214 = vunpack.c.l.b16 %v178
    %v215 = vunpack.c.l.b16 %v179
    %v216 = vunpack.c.l.b16 %v180
    %v217 = vunpack.c.l.b16 %v181
    %v218 = vunpack.c.l.b16 %v182
    %v219 = vunpack.c.l.b16 %v183
    %v220 = vpack.c.b16 %v205, %v204
    %v221 = vpack.c.b16 %v207, %v206
    %v222 = vpack.c.b16 %v209, %v208
    %v223 = vpack.c.b16 %v211, %v210
    %v224 = vpack.c.b16 %v213, %v212
    %v225 = vpack.c.b16 %v215, %v214
    %v226 = vpack.c.b16 %v217, %v216
    %v227 = vpack.c.b16 %v219, %v218
    %236 = vmatpush.bf16.msra.mxu0 %v227
    %237 = vmatpush.bf16.msra.mxu0 %v226
    %238 = vmatpush.bf16.msra.mxu0 %v225
    %239 = vmatpush.bf16.msra.mxu0 %v224
    %240 = vmatpush.bf16.msra.mxu0 %v223
    %241 = vmatpush.bf16.msra.mxu0 %v222
    %242 = vmatpush.bf16.msra.mxu0 %v221
    %243 = vmatpush.bf16.msra.mxu0 %v220
    %244 = vmatmul.bf16.gmra.mxu0 %v167
    %v245 = vpop.f32.mrf.mxu0
    %v246 = vadd.f32 %v186, %v245
    %v247 = vpop.f32.mrf.mxu0
    %248 = vdwg.mxu0
    %vm249 = vcmask 130048
    %v250 = vsel %vm249, %v246, -inf
    %251 = vmax.xlane.f32.xlu0 %v250
    %v252 = vpop.xlane.xlu0 %251
    %v253 = vsub.f32 %v246, %v252
    %v254 = vmul.f32 %v253, 1.442695
    %v255 = vpow.pop %v254
    %v256 = vsel %vm249, %v255, 0.0
    %257 = vadd.xlane.f32.xlu0 %v256
    %v258 = vpop.xlane.xlu0 %257
    %v259 = vrcp.pop %v258
    %v260 = vmul.f32 %v258, %v259
    %v261 = vsub.f32 1.0, %v260
    %v262 = vmul.f32 %v259, %v261
    %v263 = vadd.f32 %v259, %v262
    %vm264 = vweird.f32 %v258
    %vm265 = vweird.f32 %v259
    %vm266 = vmor %vm264, %vm265
    %v267 = vsel %vm266, %v259, %v263
    %v268 = vand.u32 2147483647, %v258
    %vm269 = vcmp.eq.f32.partialorder %v268, 8.507059e+37
    %v270 = vand.u32 %v258, 2147483648
    %v271 = vor.u32 1.1754944e-38, %v270
    %v272 = vsel %vm269, %v271, %v267
    %v273 = vmul.f32 %v255, %v272
    %274 = vst.msk [vmem:[#allocation5] sm:$0xff] %vm249, %v273
    // Predicated region
    $region34: #{basic_net_forward.1} parent=1 // pred_check
      _
    $region35: #{basic_net_forward.1} parent=1 // pred_check_branch
      %276 = sbr.rel (0) target = $region37
    $region36: #{basic_net_forward.1} parent=1 // pred_region
      %278 = vsyncadd [#allocation4], 0
      %s280 = sshll.u32 [#allocation5], 4
      %s281 = int_to_ptr.vmem [resolvable:$true] %s280
      %s282 = sshll.u32 %s7, 4
      %s283 = int_to_ptr.hbm [resolvable:$true] %s282
      %285 = dma.vmem_to_hbm [thread:$0]  %s281, 128, %s283, [#allocation4]
    $region37: #{basic_net_forward.1} parent=1 // pred_fallthru
      _
    // Predicated region
    $region38: #{basic_net_forward.1} parent=1 // pred_check
      _
    $region39: #{basic_net_forward.1} parent=1 // pred_check_branch
      %287 = sbr.rel (0) target = $region41
    $region40: #{basic_net_forward.1} parent=1 // pred_region
      %289 = dma.done [#allocation4], 128
    $region41: #{basic_net_forward.1} parent=1 // pred_fallthru
      _
    %290 = vsyncpa [#allocation3], 1
    %291 = vsyncpa [#allocation4], 1

</llo_original>
